<compile_context>
chip_gen: v7x
topology: tpu7x:2x2x1
jax: 0.10.0
libtpu: 0.0.40
codegen_flags: <defaults>
</compile_context>

<pallas_src>
import functools
import math

import jax
import jax.numpy as jnp
import numpy as np
from jax import lax
from jax.experimental import pallas as pl
from jax.experimental.pallas import tpu as pltpu


def _param_offsets(R, K):
    """Column layout of the single packed parameter array."""
    off_w9 = 0                       # 9   : per-(batch,channel) 3x3 taps
    off_g = 9                        # 1   : LayerNorm gamma
    off_b = 10                       # 1   : LayerNorm beta
    off_smean = 11                   # R   : block-diagonal 1/C channel-mean matrix
    off_wlo = off_smean + R          # 2K  : [wa[:C] | wt[:C]]  (avg-pool weights)
    off_whi = off_wlo + 2 * K        # 2K  : [wa[C:] | wt[C:]]  (max-pool weights)
    off_bias = off_whi + 2 * K       # 2K  : [ba | 0]           (row 0 only)
    total = off_bias + 2 * K
    padded = ((total + 127) // 128) * 128
    return off_w9, off_g, off_b, off_smean, off_wlo, off_whi, off_bias, padded


def _tree_sum(terms):
    """Balanced-tree accumulation (shorter VALU dependency chain than a serial sum)."""
    while len(terms) > 1:
        nxt = [terms[i] + terms[i + 1] for i in range(0, len(terms) - 1, 2)]
        if len(terms) % 2:
            nxt.append(terms[-1])
        terms = nxt
    return terms[0]


def _routing_kernel(H, W, C, K, B, proportion, eps, x_ref, p_ref, out_ref):
    HW = H * W
    R = B * C
    (off_w9, off_g, off_b, off_smean,
     off_wlo, off_whi, off_bias, _) = _param_offsets(R, K)

    x = x_ref[...]                                   # (R, HW): channels in sublanes, spatial in lanes
    p = p_ref[...]                                   # (R, 128): packed params (one vector load)

    g = p[:, off_g:off_g + 1]                        # (R, 1)
    bt = p[:, off_b:off_b + 1]                       # (R, 1)
    smean = p[:, off_smean:off_smean + R]            # (R, R)
    wlo = p[:, off_wlo:off_wlo + 2 * K]              # (R, 2K)
    whi = p[:, off_whi:off_whi + 2 * K]              # (R, 2K)
    bias = p[0:1, off_bias:off_bias + 2 * K]         # (1, 2K)

    # Hoisted lane-only edge-validity masks (broadcast over sublanes).
    p_idx = lax.broadcasted_iota(jnp.int32, (1, HW), 1)
    j_idx = p_idx % W
    m_h = {-1: j_idx >= 1, 0: None, 1: j_idx <= W - 2}       # horizontal taps
    m_v = {-1: p_idx >= W, 0: None, 1: p_idx < HW - W}       # vertical taps

    # --- depthwise 3x3 conv, padding=1, no bias: 9 XLU lane-rolls + masked MACs ---
    terms = []
    for dh in (-1, 0, 1):
        for dw in (-1, 0, 1):
            t = (dh + 1) * 3 + (dw + 1)
            s = dh * W + dw
            nb = x if s == 0 else pltpu.roll(x, (-s) % HW, axis=1)   # nb[:, q] = x[:, (q+s) mod HW]
            msk = None
            for m in (m_v[dh], m_h[dw]):
                if m is not None:
                    msk = m if msk is None else jnp.logical_and(msk, m)
            if msk is not None:
                nb = jnp.where(msk, nb, 0.0)
            terms.append(nb * p[:, off_w9 + t:off_w9 + t + 1])
    y = _tree_sum(terms)

    # --- LayerNorm over channels: single fused MXU pass for E[y] and E[y^2] ---
    stats = jnp.dot(smean, jnp.concatenate([y, y * y], axis=1),
                    preferred_element_type=jnp.float32)       # (R, 2*HW)
    mu = stats[:, :HW]
    var = jnp.maximum(stats[:, HW:] - mu * mu, 0.0)           # biased variance, clamped
    y = (y - mu) * lax.rsqrt(var + eps) * g + bt

    # --- ReLU ---
    y = jnp.maximum(y, 0.0)

    # --- global avg / max pool over spatial lanes -> (R, 1) ---
    avg = jnp.sum(y, axis=1, keepdims=True) * (1.0 / HW)
    mx = jnp.max(y, axis=1, keepdims=True)

    # --- fused fc_alpha | fc_theta: per-row weighted features, summed per batch ---
    contrib = avg * wlo + mx * whi                            # (R, 2K)
    rows = [jnp.sum(contrib[b * C:(b + 1) * C, :], axis=0, keepdims=True)
            for b in range(B)]                                # per-batch channel sums (no MXU)
    raw = jnp.concatenate(rows, axis=0) + bias                # (B, 2K)

    lane = lax.broadcasted_iota(jnp.int32, (B, 2 * K), 1)
    alphas = jax.nn.sigmoid(raw)
    angles = raw / (1.0 + jnp.abs(raw)) * proportion          # exact softsign (fidelity > micro-win)
    out_ref[...] = jnp.where(lane < K, alphas, angles)


def pack_routing_params(dwc_w, ln_gamma, ln_beta, wa, ba, wt, batch):
    """Init-time packing of all small parameters into one (B*C, 128) array (hoisted off the call path).

    dwc_w: (C, 1, 3, 3). wa/wt: (2C, K) (already-transposed nn.Linear weights). ba: (K,).
    """
    C = dwc_w.shape[0]
    K = wa.shape[1]
    R = batch * C
    (off_w9, off_g, off_b, off_smean,
     off_wlo, off_whi, off_bias, ppad) = _param_offsets(R, K)

    dwc_np = np.asarray(dwc_w, np.float32).reshape(C, 9)
    wa_np = np.asarray(wa, np.float32)
    wt_np = np.asarray(wt, np.float32)

    p = np.zeros((R, ppad), np.float32)
    p[:, off_w9:off_w9 + 9] = np.tile(dwc_np, (batch, 1))
    p[:, off_g] = np.tile(np.asarray(ln_gamma, np.float32), batch)
    p[:, off_b] = np.tile(np.asarray(ln_beta, np.float32), batch)
    p[:, off_smean:off_smean + R] = np.kron(np.eye(batch, dtype=np.float32),
                                            np.full((C, C), 1.0 / C, np.float32))
    p[:, off_wlo:off_wlo + 2 * K] = np.tile(
        np.concatenate([wa_np[:C], wt_np[:C]], axis=1), (batch, 1))
    p[:, off_whi:off_whi + 2 * K] = np.tile(
        np.concatenate([wa_np[C:], wt_np[C:]], axis=1), (batch, 1))
    p[0, off_bias:off_bias + K] = np.asarray(ba, np.float32)
    return jnp.asarray(p)


def make_routing_fn(B, C, H, W, K, proportion, eps=1e-5):
    """Build the jitted forward: (x_nchw, packed_params) -> (alphas, angles)."""
    R = B * C
    HW = H * W
    ppad = _param_offsets(R, K)[-1]

    kernel = functools.partial(_routing_kernel, H, W, C, K, B,
                               float(proportion), float(eps))

    pc = pl.pallas_call(
        kernel,
        out_shape=jax.ShapeDtypeStruct((B, 2 * K), jnp.float32),
        grid_spec=pltpu.PrefetchScalarGridSpec(
            num_scalar_prefetch=0,
            grid=(1,),
            in_specs=[
                pl.BlockSpec((R, HW), lambda i: (0, 0)),    # activations
                pl.BlockSpec((R, ppad), lambda i: (0, 0)),  # packed parameters
            ],
            out_specs=pl.BlockSpec((B, 2 * K), lambda i: (0, 0)),
        ),
        compiler_params=pltpu.CompilerParams(
            dimension_semantics=("arbitrary",)),
    )

    @jax.jit
    def fwd(x_nchw, params):
        # Free reshape of contiguous NCHW: channels -> sublanes, spatial -> lanes.
        x2 = x_nchw.reshape(R, HW).astype(jnp.float32)
        out = pc(x2, params)
        return out[:, :K], out[:, K:]

    return fwd


def reference(x_nchw, dwc_w, ln_gamma, ln_beta, wa, ba, wt, proportion, eps=1e-5):
    """Pure-JAX reference mirroring the PyTorch forward."""
    B, C, H, W = x_nchw.shape
    x = jnp.transpose(x_nchw, (0, 2, 3, 1))
    xp = jnp.pad(x, ((0, 0), (1, 1), (1, 1), (0, 0)))
    w = jnp.transpose(dwc_w[:, 0], (1, 2, 0))
    y = jnp.zeros((B, H, W, C), dtype=jnp.float32)
    for dh in range(3):
        for dw in range(3):
            y = y + xp[:, dh:dh + H, dw:dw + W, :] * w[dh, dw]
    mu = y.mean(-1, keepdims=True)
    var = ((y - mu) ** 2).mean(-1, keepdims=True)
    y = (y - mu) / jnp.sqrt(var + eps) * ln_gamma + ln_beta
    y = jnp.maximum(y, 0.0)
    avg = y.mean(axis=(1, 2))
    mx = y.max(axis=(1, 2))
    feat = jnp.concatenate([avg, mx], axis=-1)
    alphas = jax.nn.sigmoid(feat @ wa + ba)
    t = feat @ wt
    angles = t / (1.0 + jnp.abs(t)) * proportion
    return alphas, angles


if __name__ == "__main__":
    # Small shapes consistent with the module: in_channels=4, kernel_number=8.
    B, C, H, W, K = 2, 4, 16, 16, 8
    proportion = 40.0 / 180.0 * math.pi

    key = jax.random.PRNGKey(0)
    kx, kdw, kwa, kba, kwt = jax.random.split(key, 5)

    x = jax.random.normal(kx, (B, C, H, W), dtype=jnp.float32)

    # Deterministic synthetic parameter init (std=0.02, matching trunc_normal scale).
    dwc_w = 0.02 * jax.random.normal(kdw, (C, 1, 3, 3), dtype=jnp.float32)
    ln_gamma = jnp.ones((C,), dtype=jnp.float32)      # nn.LayerNorm default
    ln_beta = jnp.zeros((C,), dtype=jnp.float32)
    # nn.Linear stores weight as (out, in); kernel consumes its transpose (in, out).
    fc_alpha_w = 0.02 * jax.random.normal(kwa, (K, 2 * C), dtype=jnp.float32)
    fc_alpha_b = 0.1 * jax.random.normal(kba, (K,), dtype=jnp.float32)
    fc_theta_w = 0.02 * jax.random.normal(kwt, (K, 2 * C), dtype=jnp.float32)
    wa = fc_alpha_w.T
    wt = fc_theta_w.T

    # Init-time: pack parameters once (hoisted out of the per-call path).
    params = pack_routing_params(dwc_w, ln_gamma, ln_beta, wa, fc_alpha_b, wt, B)
    fwd = make_routing_fn(B, C, H, W, K, proportion)

    alphas, angles = fwd(x, params)
    jax.block_until_ready((alphas, angles))

    ref_alphas, ref_angles = reference(x, dwc_w, ln_gamma, ln_beta,
                                       wa, fc_alpha_b, wt, proportion)
    np.testing.assert_allclose(np.asarray(alphas), np.asarray(ref_alphas),
                               rtol=1e-5, atol=1e-5)
    np.testing.assert_allclose(np.asarray(angles), np.asarray(ref_angles),
                               rtol=1e-5, atol=1e-5)

    print("KERNEL_OK")
</pallas_src>

<mosaic_0001>
module attributes {stable_mosaic.version = 11 : i64} {
  func.func @_routing_kernel(%arg0: i32, %arg1: memref<8x256xf32, #tpu.memory_space<vmem>>, %arg2: memref<8x128xf32, #tpu.memory_space<vmem>>, %arg3: memref<2x16xf32, #tpu.memory_space<vmem>>) attributes {dimension_semantics = [#tpu.dimension_semantics<arbitrary>], iteration_bounds = array<i64: 1>, scalar_prefetch = 0 : i64, scratch_operands = 0 : i64, tpu.core_type = #tpu.core_type<tc>, window_params = [{pipeline_mode = #tpu.pipeline_mode<synchronous>, transform_indices = @transform_0, window_bounds = array<i64: 8, 256>}, {pipeline_mode = #tpu.pipeline_mode<synchronous>, transform_indices = @transform_1, window_bounds = array<i64: 8, 128>}, {pipeline_mode = #tpu.pipeline_mode<synchronous>, transform_indices = @transform_2, window_bounds = array<i64: 2, 16>}]} {
    %c0 = arith.constant 0 : index
    %c0_0 = arith.constant 0 : index
    %0 = vector.load %arg1[%c0, %c0_0] : memref<8x256xf32, #tpu.memory_space<vmem>>, vector<8x256xf32>
    %c0_1 = arith.constant 0 : index
    %c0_2 = arith.constant 0 : index
    %1 = vector.load %arg2[%c0_1, %c0_2] : memref<8x128xf32, #tpu.memory_space<vmem>>, vector<8x128xf32>
    %2 = vector.extract_strided_slice %1 {offsets = [0, 9], sizes = [8, 1], strides = [1, 1]} : vector<8x128xf32> to vector<8x1xf32>
    %3 = vector.extract_strided_slice %1 {offsets = [0, 10], sizes = [8, 1], strides = [1, 1]} : vector<8x128xf32> to vector<8x1xf32>
    %4 = vector.extract_strided_slice %1 {offsets = [0, 11], sizes = [8, 8], strides = [1, 1]} : vector<8x128xf32> to vector<8x8xf32>
    %5 = vector.extract_strided_slice %1 {offsets = [0, 19], sizes = [8, 16], strides = [1, 1]} : vector<8x128xf32> to vector<8x16xf32>
    %6 = vector.extract_strided_slice %1 {offsets = [0, 35], sizes = [8, 16], strides = [1, 1]} : vector<8x128xf32> to vector<8x16xf32>
    %7 = vector.extract_strided_slice %1 {offsets = [0, 51], sizes = [1, 16], strides = [1, 1]} : vector<8x128xf32> to vector<1x16xf32>
    %8 = tpu.iota {dimensions = array<i32: 1>} : vector<1x256xi32>
    %c16_i32 = arith.constant 16 : i32
    %c0_i32 = arith.constant 0 : i32
    %9 = arith.cmpi eq, %c16_i32, %c0_i32 : i32
    %c1_i32 = arith.constant 1 : i32
    %10 = arith.select %9, %c1_i32, %c16_i32 : i32
    %11 = vector.broadcast %10 : i32 to vector<1x256xi32>
    %12 = arith.remsi %8, %11 : vector<1x256xi32>
    %c0_i32_3 = arith.constant 0 : i32
    %13 = vector.broadcast %c0_i32_3 : i32 to vector<1x256xi32>
    %14 = arith.cmpi ne, %12, %13 : vector<1x256xi32>
    %c0_i32_4 = arith.constant 0 : i32
    %15 = vector.broadcast %c0_i32_4 : i32 to vector<1x256xi32>
    %16 = arith.cmpi slt, %12, %15 : vector<1x256xi32>
    %c0_i32_5 = arith.constant 0 : i32
    %17 = arith.cmpi slt, %10, %c0_i32_5 : i32
    %18 = vector.broadcast %17 : i1 to vector<1x256xi1>
    %19 = vector.broadcast %18 : vector<1x256xi1> to vector<1x256xi1>
    %20 = arith.xori %16, %19 : vector<1x256xi1>
    %21 = arith.andi %20, %14 : vector<1x256xi1>
    %22 = vector.broadcast %10 : i32 to vector<1x256xi32>
    %23 = arith.addi %12, %22 : vector<1x256xi32>
    %24 = arith.select %21, %23, %12 : vector<1x256xi1>, vector<1x256xi32>
    %c1_i32_6 = arith.constant 1 : i32
    %25 = vector.broadcast %c1_i32_6 : i32 to vector<1x256xi32>
    %26 = arith.cmpi sge, %24, %25 : vector<1x256xi32>
    %c14_i32 = arith.constant 14 : i32
    %27 = vector.broadcast %c14_i32 : i32 to vector<1x256xi32>
    %28 = arith.cmpi sle, %24, %27 : vector<1x256xi32>
    %c16_i32_7 = arith.constant 16 : i32
    %29 = vector.broadcast %c16_i32_7 : i32 to vector<1x256xi32>
    %30 = arith.cmpi sge, %8, %29 : vector<1x256xi32>
    %c240_i32 = arith.constant 240 : i32
    %31 = vector.broadcast %c240_i32 : i32 to vector<1x256xi32>
    %32 = arith.cmpi slt, %8, %31 : vector<1x256xi32>
    %c17_i32 = arith.constant 17 : i32
    %33 = tpu.dynamic_rotate %0 by %c17_i32 dim 1 : vector<8x256xf32>, i32 -> vector<8x256xf32>
    %34 = arith.andi %30, %26 : vector<1x256xi1>
    %cst = arith.constant 0.000000e+00 : f32
    %35 = vector.shape_cast %34 : vector<1x256xi1> to vector<1x256xi1>
    %36 = vector.broadcast %35 : vector<1x256xi1> to vector<8x256xi1>
    %37 = vector.broadcast %cst : f32 to vector<8x256xf32>
    %38 = arith.select %36, %33, %37 : vector<8x256xi1>, vector<8x256xf32>
    %39 = vector.extract_strided_slice %1 {offsets = [0, 0], sizes = [8, 1], strides = [1, 1]} : vector<8x128xf32> to vector<8x1xf32>
    %40 = vector.broadcast %39 : vector<8x1xf32> to vector<8x256xf32>
    %41 = arith.mulf %38, %40 : vector<8x256xf32>
    %c16_i32_8 = arith.constant 16 : i32
    %42 = tpu.dynamic_rotate %0 by %c16_i32_8 dim 1 : vector<8x256xf32>, i32 -> vector<8x256xf32>
    %cst_9 = arith.constant 0.000000e+00 : f32
    %43 = vector.shape_cast %30 : vector<1x256xi1> to vector<1x256xi1>
    %44 = vector.broadcast %43 : vector<1x256xi1> to vector<8x256xi1>
    %45 = vector.broadcast %cst_9 : f32 to vector<8x256xf32>
    %46 = arith.select %44, %42, %45 : vector<8x256xi1>, vector<8x256xf32>
    %47 = vector.extract_strided_slice %1 {offsets = [0, 1], sizes = [8, 1], strides = [1, 1]} : vector<8x128xf32> to vector<8x1xf32>
    %48 = vector.broadcast %47 : vector<8x1xf32> to vector<8x256xf32>
    %49 = arith.mulf %46, %48 : vector<8x256xf32>
    %c15_i32 = arith.constant 15 : i32
    %50 = tpu.dynamic_rotate %0 by %c15_i32 dim 1 : vector<8x256xf32>, i32 -> vector<8x256xf32>
    %51 = arith.andi %30, %28 : vector<1x256xi1>
    %cst_10 = arith.constant 0.000000e+00 : f32
    %52 = vector.shape_cast %51 : vector<1x256xi1> to vector<1x256xi1>
    %53 = vector.broadcast %52 : vector<1x256xi1> to vector<8x256xi1>
    %54 = vector.broadcast %cst_10 : f32 to vector<8x256xf32>
    %55 = arith.select %53, %50, %54 : vector<8x256xi1>, vector<8x256xf32>
    %56 = vector.extract_strided_slice %1 {offsets = [0, 2], sizes = [8, 1], strides = [1, 1]} : vector<8x128xf32> to vector<8x1xf32>
    %57 = vector.broadcast %56 : vector<8x1xf32> to vector<8x256xf32>
    %58 = arith.mulf %55, %57 : vector<8x256xf32>
    %c1_i32_11 = arith.constant 1 : i32
    %59 = tpu.dynamic_rotate %0 by %c1_i32_11 dim 1 : vector<8x256xf32>, i32 -> vector<8x256xf32>
    %cst_12 = arith.constant 0.000000e+00 : f32
    %60 = vector.shape_cast %26 : vector<1x256xi1> to vector<1x256xi1>
    %61 = vector.broadcast %60 : vector<1x256xi1> to vector<8x256xi1>
    %62 = vector.broadcast %cst_12 : f32 to vector<8x256xf32>
    %63 = arith.select %61, %59, %62 : vector<8x256xi1>, vector<8x256xf32>
    %64 = vector.extract_strided_slice %1 {offsets = [0, 3], sizes = [8, 1], strides = [1, 1]} : vector<8x128xf32> to vector<8x1xf32>
    %65 = vector.broadcast %64 : vector<8x1xf32> to vector<8x256xf32>
    %66 = arith.mulf %63, %65 : vector<8x256xf32>
    %67 = vector.extract_strided_slice %1 {offsets = [0, 4], sizes = [8, 1], strides = [1, 1]} : vector<8x128xf32> to vector<8x1xf32>
    %68 = vector.broadcast %67 : vector<8x1xf32> to vector<8x256xf32>
    %69 = arith.mulf %0, %68 : vector<8x256xf32>
    %c255_i32 = arith.constant 255 : i32
    %70 = tpu.dynamic_rotate %0 by %c255_i32 dim 1 : vector<8x256xf32>, i32 -> vector<8x256xf32>
    %cst_13 = arith.constant 0.000000e+00 : f32
    %71 = vector.shape_cast %28 : vector<1x256xi1> to vector<1x256xi1>
    %72 = vector.broadcast %71 : vector<1x256xi1> to vector<8x256xi1>
    %73 = vector.broadcast %cst_13 : f32 to vector<8x256xf32>
    %74 = arith.select %72, %70, %73 : vector<8x256xi1>, vector<8x256xf32>
    %75 = vector.extract_strided_slice %1 {offsets = [0, 5], sizes = [8, 1], strides = [1, 1]} : vector<8x128xf32> to vector<8x1xf32>
    %76 = vector.broadcast %75 : vector<8x1xf32> to vector<8x256xf32>
    %77 = arith.mulf %74, %76 : vector<8x256xf32>
    %c241_i32 = arith.constant 241 : i32
    %78 = tpu.dynamic_rotate %0 by %c241_i32 dim 1 : vector<8x256xf32>, i32 -> vector<8x256xf32>
    %79 = arith.andi %32, %26 : vector<1x256xi1>
    %cst_14 = arith.constant 0.000000e+00 : f32
    %80 = vector.shape_cast %79 : vector<1x256xi1> to vector<1x256xi1>
    %81 = vector.broadcast %80 : vector<1x256xi1> to vector<8x256xi1>
    %82 = vector.broadcast %cst_14 : f32 to vector<8x256xf32>
    %83 = arith.select %81, %78, %82 : vector<8x256xi1>, vector<8x256xf32>
    %84 = vector.extract_strided_slice %1 {offsets = [0, 6], sizes = [8, 1], strides = [1, 1]} : vector<8x128xf32> to vector<8x1xf32>
    %85 = vector.broadcast %84 : vector<8x1xf32> to vector<8x256xf32>
    %86 = arith.mulf %83, %85 : vector<8x256xf32>
    %c240_i32_15 = arith.constant 240 : i32
    %87 = tpu.dynamic_rotate %0 by %c240_i32_15 dim 1 : vector<8x256xf32>, i32 -> vector<8x256xf32>
    %cst_16 = arith.constant 0.000000e+00 : f32
    %88 = vector.shape_cast %32 : vector<1x256xi1> to vector<1x256xi1>
    %89 = vector.broadcast %88 : vector<1x256xi1> to vector<8x256xi1>
    %90 = vector.broadcast %cst_16 : f32 to vector<8x256xf32>
    %91 = arith.select %89, %87, %90 : vector<8x256xi1>, vector<8x256xf32>
    %92 = vector.extract_strided_slice %1 {offsets = [0, 7], sizes = [8, 1], strides = [1, 1]} : vector<8x128xf32> to vector<8x1xf32>
    %93 = vector.broadcast %92 : vector<8x1xf32> to vector<8x256xf32>
    %94 = arith.mulf %91, %93 : vector<8x256xf32>
    %c239_i32 = arith.constant 239 : i32
    %95 = tpu.dynamic_rotate %0 by %c239_i32 dim 1 : vector<8x256xf32>, i32 -> vector<8x256xf32>
    %96 = arith.andi %32, %28 : vector<1x256xi1>
    %cst_17 = arith.constant 0.000000e+00 : f32
    %97 = vector.shape_cast %96 : vector<1x256xi1> to vector<1x256xi1>
    %98 = vector.broadcast %97 : vector<1x256xi1> to vector<8x256xi1>
    %99 = vector.broadcast %cst_17 : f32 to vector<8x256xf32>
    %100 = arith.select %98, %95, %99 : vector<8x256xi1>, vector<8x256xf32>
    %101 = vector.extract_strided_slice %1 {offsets = [0, 8], sizes = [8, 1], strides = [1, 1]} : vector<8x128xf32> to vector<8x1xf32>
    %102 = vector.broadcast %101 : vector<8x1xf32> to vector<8x256xf32>
    %103 = arith.mulf %100, %102 : vector<8x256xf32>
    %104 = arith.addf %41, %49 : vector<8x256xf32>
    %105 = arith.addf %58, %66 : vector<8x256xf32>
    %106 = arith.addf %69, %77 : vector<8x256xf32>
    %107 = arith.addf %86, %94 : vector<8x256xf32>
    %108 = arith.addf %104, %105 : vector<8x256xf32>
    %109 = arith.addf %106, %107 : vector<8x256xf32>
    %110 = arith.addf %108, %109 : vector<8x256xf32>
    %111 = arith.addf %110, %103 : vector<8x256xf32>
    %112 = arith.mulf %111, %111 : vector<8x256xf32>
    %113 = tpu.concatenate %111, %112 in 1 : vector<8x256xf32>, vector<8x256xf32> -> vector<8x512xf32>
    %cst_18 = arith.constant dense<0.000000e+00> : vector<8x512xf32>
    %114 = tpu.matmul %4, %113, %cst_18 {dimension_numbers = #tpu.dot_dimension_numbers<[1], [0], [0], [1], [0, 0, 1, 1], [], []>} : vector<8x8xf32>, vector<8x512xf32>, vector<8x512xf32> -> vector<8x512xf32>
    %115 = vector.extract_strided_slice %114 {offsets = [0, 0], sizes = [8, 256], strides = [1, 1]} : vector<8x512xf32> to vector<8x256xf32>
    %116 = vector.extract_strided_slice %114 {offsets = [0, 256], sizes = [8, 256], strides = [1, 1]} : vector<8x512xf32> to vector<8x256xf32>
    %117 = arith.mulf %115, %115 : vector<8x256xf32>
    %118 = arith.subf %116, %117 : vector<8x256xf32>
    %cst_19 = arith.constant 0.000000e+00 : f32
    %119 = vector.broadcast %cst_19 : f32 to vector<8x256xf32>
    %120 = arith.maximumf %118, %119 : vector<8x256xf32>
    %121 = arith.subf %111, %115 : vector<8x256xf32>
    %cst_20 = arith.constant 9.99999974E-6 : f32
    %122 = vector.broadcast %cst_20 : f32 to vector<8x256xf32>
    %123 = arith.addf %120, %122 : vector<8x256xf32>
    %124 = math.rsqrt %123 : vector<8x256xf32>
    %125 = arith.mulf %121, %124 : vector<8x256xf32>
    %126 = vector.broadcast %2 : vector<8x1xf32> to vector<8x256xf32>
    %127 = arith.mulf %125, %126 : vector<8x256xf32>
    %128 = vector.broadcast %3 : vector<8x1xf32> to vector<8x256xf32>
    %129 = arith.addf %127, %128 : vector<8x256xf32>
    %cst_21 = arith.constant 0.000000e+00 : f32
    %130 = vector.broadcast %cst_21 : f32 to vector<8x256xf32>
    %131 = arith.maximumf %129, %130 : vector<8x256xf32>
    %cst_22 = arith.constant dense<0.000000e+00> : vector<8xf32>
    %132 = vector.multi_reduction <add>, %131, %cst_22 [1] : vector<8x256xf32> to vector<8xf32>
    %133 = vector.shape_cast %132 : vector<8xf32> to vector<8x1xf32>
    %cst_23 = arith.constant 3.906250e-03 : f32
    %134 = vector.broadcast %cst_23 : f32 to vector<8x1xf32>
    %135 = arith.mulf %133, %134 : vector<8x1xf32>
    %cst_24 = arith.constant dense<0xFF800000> : vector<8xf32>
    %136 = vector.multi_reduction <maximumf>, %131, %cst_24 [1] : vector<8x256xf32> to vector<8xf32>
    %137 = vector.shape_cast %136 : vector<8xf32> to vector<8x1xf32>
    %138 = vector.broadcast %135 : vector<8x1xf32> to vector<8x16xf32>
    %139 = arith.mulf %138, %5 : vector<8x16xf32>
    %140 = vector.broadcast %137 : vector<8x1xf32> to vector<8x16xf32>
    %141 = arith.mulf %140, %6 : vector<8x16xf32>
    %142 = arith.addf %139, %141 : vector<8x16xf32>
    %143 = vector.extract_strided_slice %142 {offsets = [0, 0], sizes = [4, 16], strides = [1, 1]} : vector<8x16xf32> to vector<4x16xf32>
    %cst_25 = arith.constant dense<0.000000e+00> : vector<16xf32>
    %144 = vector.multi_reduction <add>, %143, %cst_25 [0] : vector<4x16xf32> to vector<16xf32>
    %145 = vector.shape_cast %144 : vector<16xf32> to vector<1x16xf32>
    %146 = vector.extract_strided_slice %142 {offsets = [4, 0], sizes = [4, 16], strides = [1, 1]} : vector<8x16xf32> to vector<4x16xf32>
    %cst_26 = arith.constant dense<0.000000e+00> : vector<16xf32>
    %147 = vector.multi_reduction <add>, %146, %cst_26 [0] : vector<4x16xf32> to vector<16xf32>
    %148 = vector.shape_cast %147 : vector<16xf32> to vector<1x16xf32>
    %149 = tpu.concatenate %145, %148 in 0 : vector<1x16xf32>, vector<1x16xf32> -> vector<2x16xf32>
    %150 = vector.broadcast %7 : vector<1x16xf32> to vector<2x16xf32>
    %151 = arith.addf %149, %150 : vector<2x16xf32>
    %152 = tpu.iota {dimensions = array<i32: 1>} : vector<2x16xi32>
    %153 = arith.negf %151 : vector<2x16xf32>
    %154 = math.exp %153 : vector<2x16xf32>
    %cst_27 = arith.constant 1.000000e+00 : f32
    %155 = vector.broadcast %cst_27 : f32 to vector<2x16xf32>
    %156 = arith.addf %155, %154 : vector<2x16xf32>
    %157 = arith.divf %155, %156 : vector<2x16xf32>
    %158 = math.absf %151 : vector<2x16xf32>
    %cst_28 = arith.constant 1.000000e+00 : f32
    %159 = vector.broadcast %cst_28 : f32 to vector<2x16xf32>
    %160 = arith.addf %159, %158 : vector<2x16xf32>
    %161 = arith.divf %151, %160 : vector<2x16xf32>
    %cst_29 = arith.constant 0.69813168 : f32
    %162 = vector.broadcast %cst_29 : f32 to vector<2x16xf32>
    %163 = arith.mulf %161, %162 : vector<2x16xf32>
    %c8_i32 = arith.constant 8 : i32
    %164 = vector.broadcast %c8_i32 : i32 to vector<2x16xi32>
    %165 = arith.cmpi slt, %152, %164 : vector<2x16xi32>
    %166 = arith.select %165, %157, %163 : vector<2x16xi1>, vector<2x16xf32>
    %c0_30 = arith.constant 0 : index
    %c0_31 = arith.constant 0 : index
    %167 = vector.load %arg3[%c0_30, %c0_31] : memref<2x16xf32, #tpu.memory_space<vmem>>, vector<2x16xf32>
    tpu.vector_store %arg3[%c0_30, %c0_31], %166 {strides = array<i32>} : memref<2x16xf32, #tpu.memory_space<vmem>>, vector<2x16xf32>,
    return
  }
  func.func @transform_0(%arg0: i32) -> (i32, i32) {
    %c0_i32 = arith.constant 0 : i32
    %c0_i32_0 = arith.constant 0 : i32
    %c0_i32_1 = arith.constant 0 : i32
    return %c0_i32, %c0_i32_0 : i32, i32
  }
  func.func @transform_1(%arg0: i32) -> (i32, i32) {
    %c0_i32 = arith.constant 0 : i32
    %c0_i32_0 = arith.constant 0 : i32
    %c0_i32_1 = arith.constant 0 : i32
    return %c0_i32, %c0_i32_0 : i32, i32
  }
  func.func @transform_2(%arg0: i32) -> (i32, i32) {
    %c0_i32 = arith.constant 0 : i32
    %c0_i32_0 = arith.constant 0 : i32
    %c0_i32_1 = arith.constant 0 : i32
    return %c0_i32, %c0_i32_0 : i32, i32
  }
}

</mosaic_0001>

<llo_original>
// kernel: fwd.1
$region0: #{fwd.1}
  #allocation0 [shape = 'u32[]', space=smem, size = 0x4, offset = 0x4, fixed_abs, tag = 'smem constant byte address 0x4 - core index']
  #allocation1 [shape = 'u32[144,128]{1,0:T(1,128)}', space=vmem, size = 0x12000, scoped, tag = 'internal scratch']
  %s0 = inlined_call_operand.vmem [shape: f32[8,256], index: 0, kind: input, shape index: {}]
  %s1 = inlined_call_operand.vmem [shape: f32[8,128], index: 1, kind: input, shape index: {}]
  %s2 = inlined_call_operand.vmem [shape: f32[2,16], index: 2, kind: output, shape index: {}]
  %s3 = sld [smem:[#allocation0]]
  $region18: #{fwd.1} parent=0
    _
  %s5 = ssub.s32 1, %s3
  %s6 = scalar_select 0, %s5, %s3
  // Predicated region
  $region2: #{fwd.1} parent=0 // pred_check
    _
  $region3: #{fwd.1} parent=0 // pred_check_branch
    %8 = sbr.rel (0) target = $region5
  $region4: #{fwd.1} parent=0 // pred_region
    _
  $region5: #{fwd.1} parent=0 // pred_fallthru
    _
  // Predicated region
  $region6: #{fwd.1} parent=0 // pred_check
    _
  $region7: #{fwd.1} parent=0 // pred_check_branch
    %10 = sbr.rel (0) target = $region9
  $region8: #{fwd.1} parent=0 // pred_region
    _
  $region9: #{fwd.1} parent=0 // pred_fallthru
    _
  %v11 = vld [vmem:[%s0] sm:$0xff]
  %v12 = vld [vmem:[%s0 + $0x8] sm:$0xff]
  %v13 = vld [vmem:[%s1] sm:$0xff]
  %v14 = vlaneseq
  %v15 = vand.u32 %v14, 127
  %v16 = vadd.s32 %v15, 128
  %vm17 = vcmp.lt.s32.totalorder %v15, 0
  %v18 = vsub.s32 0, %v15
  %v19 = vsel %vm17, %v18, %v15
  %v20 = vshrl.u32 %v19, 4
  %v21 = vand.u32 %v19, 15
  %v22 = vsub.s32 0, %v21
  %v23 = vsel %vm17, %v22, %v21
  %vm24 = vcmp.lt.s32.totalorder %v16, 0
  %v25 = vsub.s32 0, %v16
  %v26 = vsel %vm24, %v25, %v16
  %v27 = vshrl.u32 %v26, 4
  %v28 = vand.u32 %v26, 15
  %v29 = vsub.s32 0, %v28
  %v30 = vsel %vm24, %v29, %v28
  %vm31 = vcmp.ne.s32.totalorder %v23, 0
  %vm32 = vcmp.ne.s32.totalorder %v30, 0
  %vm33 = vcmp.lt.s32.totalorder %v23, 0
  %vm34 = vcmp.lt.s32.totalorder %v30, 0
  %vm35 = vmand %vm33, %vm31
  %vm36 = vmand %vm34, %vm32
  %v37 = vadd.s32 %v23, 16
  %v38 = vadd.s32 %v30, 16
  %v39 = vsel %vm35, %v37, %v23
  %v40 = vsel %vm36, %v38, %v30
  %vm41 = vcmp.ge.s32.totalorder %v39, 1
  %vm42 = vcmp.ge.s32.totalorder %v40, 1
  %vm43 = vcmp.le.s32.totalorder %v39, 14
  %vm44 = vcmp.le.s32.totalorder %v40, 14
  %vm45 = vcmp.ge.s32.totalorder %v15, 16
  %vm46 = vcmp.ge.s32.totalorder %v16, 16
  %vm47 = vcmp.lt.s32.totalorder %v15, 240
  %vm48 = vcmp.lt.s32.totalorder %v16, 240
  %49 = vrot.lane.b32.xlu0 %v11, 17
  %v50 = vpop.permute.xlu0 %49
  %51 = vrot.lane.b32.xlu0 %v12, 17
  %v52 = vpop.permute.xlu0 %51
  %vm53 = vcmp.lt.s32.totalorder %v15, 17
  %v54 = vsel %vm53, %v50, %v52
  %v55 = vsel %vm53, %v52, %v50
  %vm56 = vmand %vm45, %vm41
  %vm57 = vmand %vm46, %vm42
  %v58 = vsel %vm56, 1, 0
  %v59 = vsel %vm57, 1, 0
  %vm60 = vcmp.eq.s32.totalorder %v58, 1
  %vm61 = vcmp.eq.s32.totalorder %v59, 1
  %v62 = vsel %vm60, %v55, 0.0
  %v63 = vsel %vm61, %v54, 0.0
  %65 = vset.pattern.permute.xlu0 0
  %66 = vperm.xlu0 %65, %v13
  %v67 = vpop.permute.xlu0 %66
  %v69 = vmul.f32 %v62, %v67
  %v70 = vmul.f32 %v63, %v67
  %71 = vrot.lane.b32.xlu0 %v11, 16
  %v72 = vpop.permute.xlu0 %71
  %73 = vrot.lane.b32.xlu0 %v12, 16
  %v74 = vpop.permute.xlu0 %73
  %vm75 = vcmp.lt.s32.totalorder %v15, 16
  %v76 = vsel %vm75, %v72, %v74
  %v77 = vsel %vm75, %v74, %v72
  %v78 = vsel %vm45, 1, 0
  %v79 = vsel %vm46, 1, 0
  %vm80 = vcmp.eq.s32.totalorder %v78, 1
  %vm81 = vcmp.eq.s32.totalorder %v79, 1
  %v82 = vsel %vm80, %v77, 0.0
  %v83 = vsel %vm81, %v76, 0.0
  %84 = vset.pattern.permute.xlu0 1
  %85 = vperm.xlu0 %84, %v13
  %v86 = vpop.permute.xlu0 %85
  %v88 = vmul.f32 %v82, %v86
  %v89 = vmul.f32 %v83, %v86
  %90 = vrot.lane.b32.xlu0 %v11, 15
  %v91 = vpop.permute.xlu0 %90
  %92 = vrot.lane.b32.xlu0 %v12, 15
  %v93 = vpop.permute.xlu0 %92
  %vm94 = vcmp.lt.s32.totalorder %v15, 15
  %v95 = vsel %vm94, %v91, %v93
  %v96 = vsel %vm94, %v93, %v91
  %vm97 = vmand %vm45, %vm43
  %vm98 = vmand %vm46, %vm44
  %v99 = vsel %vm97, 1, 0
  %v100 = vsel %vm98, 1, 0
  %vm101 = vcmp.eq.s32.totalorder %v99, 1
  %vm102 = vcmp.eq.s32.totalorder %v100, 1
  %v103 = vsel %vm101, %v96, 0.0
  %v104 = vsel %vm102, %v95, 0.0
  %105 = vset.pattern.permute.xlu0 2
  %106 = vperm.xlu0 %105, %v13
  %v107 = vpop.permute.xlu0 %106
  %v109 = vmul.f32 %v103, %v107
  %v110 = vmul.f32 %v104, %v107
  %111 = vrot.lane.b32.xlu0 %v11, 1
  %v112 = vpop.permute.xlu0 %111
  %113 = vrot.lane.b32.xlu0 %v12, 1
  %v114 = vpop.permute.xlu0 %113
  %vm115 = vcmp.lt.s32.totalorder %v15, 1
  %v116 = vsel %vm115, %v112, %v114
  %v117 = vsel %vm115, %v114, %v112
  %v118 = vsel %vm41, 1, 0
  %v119 = vsel %vm42, 1, 0
  %vm120 = vcmp.eq.s32.totalorder %v118, 1
  %vm121 = vcmp.eq.s32.totalorder %v119, 1
  %v122 = vsel %vm120, %v117, 0.0
  %v123 = vsel %vm121, %v116, 0.0
  %124 = vset.pattern.permute.xlu0 3
  %125 = vperm.xlu0 %124, %v13
  %v126 = vpop.permute.xlu0 %125
  %v128 = vmul.f32 %v122, %v126
  %v129 = vmul.f32 %v123, %v126
  %130 = vset.pattern.permute.xlu0 4
  %131 = vperm.xlu0 %130, %v13
  %v132 = vpop.permute.xlu0 %131
  %v134 = vmul.f32 %v11, %v132
  %v135 = vmul.f32 %v12, %v132
  %136 = vrot.lane.b32.xlu0 %v11, 127
  %v137 = vpop.permute.xlu0 %136
  %138 = vrot.lane.b32.xlu0 %v12, 127
  %v139 = vpop.permute.xlu0 %138
  %vm140 = vcmp.lt.s32.totalorder %v15, 127
  %v141 = vsel %vm140, %v137, %v139
  %v142 = vsel %vm140, %v139, %v137
  %v143 = vsel %vm43, 1, 0
  %v144 = vsel %vm44, 1, 0
  %vm145 = vcmp.eq.s32.totalorder %v143, 1
  %vm146 = vcmp.eq.s32.totalorder %v144, 1
  %v147 = vsel %vm145, %v141, 0.0
  %v148 = vsel %vm146, %v142, 0.0
  %149 = vset.pattern.permute.xlu0 5
  %150 = vperm.xlu0 %149, %v13
  %v151 = vpop.permute.xlu0 %150
  %v153 = vmul.f32 %v147, %v151
  %v154 = vmul.f32 %v148, %v151
  %155 = vrot.lane.b32.xlu0 %v11, 113
  %v156 = vpop.permute.xlu0 %155
  %157 = vrot.lane.b32.xlu0 %v12, 113
  %v158 = vpop.permute.xlu0 %157
  %vm159 = vcmp.lt.s32.totalorder %v15, 113
  %v160 = vsel %vm159, %v156, %v158
  %v161 = vsel %vm159, %v158, %v156
  %vm162 = vmand %vm47, %vm41
  %vm163 = vmand %vm48, %vm42
  %v164 = vsel %vm162, 1, 0
  %v165 = vsel %vm163, 1, 0
  %vm166 = vcmp.eq.s32.totalorder %v164, 1
  %vm167 = vcmp.eq.s32.totalorder %v165, 1
  %v168 = vsel %vm166, %v160, 0.0
  %v169 = vsel %vm167, %v161, 0.0
  %170 = vset.pattern.permute.xlu0 6
  %171 = vperm.xlu0 %170, %v13
  %v172 = vpop.permute.xlu0 %171
  %v174 = vmul.f32 %v168, %v172
  %v175 = vmul.f32 %v169, %v172
  %176 = vrot.lane.b32.xlu0 %v11, 112
  %v177 = vpop.permute.xlu0 %176
  %178 = vrot.lane.b32.xlu0 %v12, 112
  %v179 = vpop.permute.xlu0 %178
  %vm180 = vcmp.lt.s32.totalorder %v15, 112
  %v181 = vsel %vm180, %v177, %v179
  %v182 = vsel %vm180, %v179, %v177
  %v183 = vsel %vm47, 1, 0
  %v184 = vsel %vm48, 1, 0
  %vm185 = vcmp.eq.s32.totalorder %v183, 1
  %vm186 = vcmp.eq.s32.totalorder %v184, 1
  %v187 = vsel %vm185, %v181, 0.0
  %v188 = vsel %vm186, %v182, 0.0
  %189 = vset.pattern.permute.xlu0 7
  %190 = vperm.xlu0 %189, %v13
  %v191 = vpop.permute.xlu0 %190
  %v193 = vmul.f32 %v187, %v191
  %v194 = vmul.f32 %v188, %v191
  %195 = vrot.lane.b32.xlu0 %v11, 111
  %v196 = vpop.permute.xlu0 %195
  %197 = vrot.lane.b32.xlu0 %v12, 111
  %v198 = vpop.permute.xlu0 %197
  %vm199 = vcmp.lt.s32.totalorder %v15, 111
  %v200 = vsel %vm199, %v196, %v198
  %v201 = vsel %vm199, %v198, %v196
  %vm202 = vmand %vm47, %vm43
  %vm203 = vmand %vm48, %vm44
  %v204 = vsel %vm202, 1, 0
  %v205 = vsel %vm203, 1, 0
  %vm206 = vcmp.eq.s32.totalorder %v204, 1
  %vm207 = vcmp.eq.s32.totalorder %v205, 1
  %v208 = vsel %vm206, %v200, 0.0
  %v209 = vsel %vm207, %v201, 0.0
  %210 = vset.pattern.permute.xlu0 8
  %211 = vperm.xlu0 %210, %v13
  %v212 = vpop.permute.xlu0 %211
  %v214 = vmul.f32 %v208, %v212
  %v215 = vmul.f32 %v209, %v212
  %v216 = vadd.f32 %v69, %v88
  %v217 = vadd.f32 %v70, %v89
  %v218 = vadd.f32 %v109, %v128
  %v219 = vadd.f32 %v110, %v129
  %v220 = vadd.f32 %v134, %v153
  %v221 = vadd.f32 %v135, %v154
  %v222 = vadd.f32 %v174, %v193
  %v223 = vadd.f32 %v175, %v194
  %v224 = vadd.f32 %v216, %v218
  %v225 = vadd.f32 %v217, %v219
  %v226 = vadd.f32 %v220, %v222
  %v227 = vadd.f32 %v221, %v223
  %v228 = vadd.f32 %v224, %v226
  %v229 = vadd.f32 %v225, %v227
  %v230 = vadd.f32 %v228, %v214
  %v231 = vadd.f32 %v229, %v215
  %v232 = vmul.f32 %v230, %v230
  %v233 = vmul.f32 %v231, %v231
  %234 = vrot.lane.b32.xlu0 %v13, 117
  %v235 = vpop.permute.xlu0 %234
  %vm236 = vcmask 64512
  %v237 = vsel %vm236, %v235, 0
  %239 = vmatprep.subr.mxu0 %v231
  %240 = vmatpush1.msra.mxu0 %v230
  %241 = vmatprep.subr.mxu0 0.0
  %242 = vmatpush1.msra.mxu0 0.0
  %243 = vmatprep.subr.mxu0 0.0
  %244 = vmatpush1.msra.mxu0 0.0
  %245 = vmatprep.subr.mxu0 0.0
  %246 = vmatpush1.msra.mxu0 0.0
  %247 = vmatprep.subr.mxu0 0.0
  %248 = vmatpush1.msra.mxu0 0.0
  %249 = vmatprep.subr.mxu0 0.0
  %250 = vmatpush1.msra.mxu0 0.0
  %251 = vmatprep.subr.mxu0 0.0
  %252 = vmatpush1.msra.mxu0 0.0
  %253 = vmatprep.subr.mxu0 0.0
  %254 = vmatpush1.msra.mxu0 0.0
  %255 = vmatprep.subr.mxu0 0.0
  %256 = vmatpush1.msra.mxu0 0.0
  %257 = vmatprep.subr.mxu0 0.0
  %258 = vmatpush1.msra.mxu0 0.0
  %259 = vmatprep.subr.mxu0 0.0
  %260 = vmatpush1.msra.mxu0 0.0
  %261 = vmatprep.subr.mxu0 0.0
  %262 = vmatpush1.msra.mxu0 0.0
  %263 = vmatprep.subr.mxu0 0.0
  %264 = vmatpush1.msra.mxu0 0.0
  %265 = vmatprep.subr.mxu0 0.0
  %266 = vmatpush1.msra.mxu0 0.0
  %267 = vmatprep.subr.mxu0 0.0
  %268 = vmatpush1.msra.mxu0 0.0
  %269 = vmatprep.subr.mxu0 0.0
  %270 = vmatpush1.msra.mxu0 0.0
  %271 = vmatprep.subr.mxu0 0.0
  %272 = vmatpush1.msra.mxu0 0.0
  %273 = vmatprep.subr.mxu0 0.0
  %274 = vmatpush1.msra.mxu0 0.0
  %275 = vmatprep.subr.mxu0 0.0
  %276 = vmatpush1.msra.mxu0 0.0
  %277 = vmatprep.subr.mxu0 0.0
  %278 = vmatpush1.msra.mxu0 0.0
  %279 = vmatprep.subr.mxu0 0.0
  %280 = vmatpush1.msra.mxu0 0.0
  %281 = vmatprep.subr.mxu0 0.0
  %282 = vmatpush1.msra.mxu0 0.0
  %283 = vmatprep.subr.mxu0 0.0
  %284 = vmatpush1.msra.mxu0 0.0
  %285 = vmatprep.subr.mxu0 0.0
  %286 = vmatpush1.msra.mxu0 0.0
  %287 = vmatprep.subr.mxu0 0.0
  %288 = vmatpush1.msra.mxu0 0.0
  %289 = vmatprep.subr.mxu0 0.0
  %290 = vmatpush1.msra.mxu0 0.0
  %291 = vmatprep.subr.mxu0 0.0
  %292 = vmatpush1.msra.mxu0 0.0
  %293 = vmatprep.subr.mxu0 0.0
  %294 = vmatpush1.msra.mxu0 0.0
  %295 = vmatprep.subr.mxu0 0.0
  %296 = vmatpush1.msra.mxu0 0.0
  %297 = vmatprep.subr.mxu0 0.0
  %298 = vmatpush1.msra.mxu0 0.0
  %299 = vmatprep.subr.mxu0 0.0
  %300 = vmatpush1.msra.mxu0 0.0
  %301 = vmatprep.subr.mxu0 0.0
  %302 = vmatpush1.msra.mxu0 0.0
  %303 = vmatprep.mubr.f32.mxu0 0.0
  %304 = vmatmul.mubr.f32.gmra.mrb[0].mxu0 %v237
  %v305 = vpop.f32.mrb[0].mxu0
  %v306 = vadd.f32 0.0, %v305
  %v307 = vpop.f32.mrb[0].mxu0
  %v308 = vadd.f32 0.0, %v307
  %309 = vdwg.mxu0
  %310 = vmatprep.subr.mxu0 %v233
  %311 = vmatpush1.msra.mxu0 %v232
  %312 = vmatprep.subr.mxu0 0.0
  %313 = vmatpush1.msra.mxu0 0.0
  %314 = vmatprep.subr.mxu0 0.0
  %315 = vmatpush1.msra.mxu0 0.0
  %316 = vmatprep.subr.mxu0 0.0
  %317 = vmatpush1.msra.mxu0 0.0
  %318 = vmatprep.subr.mxu0 0.0
  %319 = vmatpush1.msra.mxu0 0.0
  %320 = vmatprep.subr.mxu0 0.0
  %321 = vmatpush1.msra.mxu0 0.0
  %322 = vmatprep.subr.mxu0 0.0
  %323 = vmatpush1.msra.mxu0 0.0
  %324 = vmatprep.subr.mxu0 0.0
  %325 = vmatpush1.msra.mxu0 0.0
  %326 = vmatprep.subr.mxu0 0.0
  %327 = vmatpush1.msra.mxu0 0.0
  %328 = vmatprep.subr.mxu0 0.0
  %329 = vmatpush1.msra.mxu0 0.0
  %330 = vmatprep.subr.mxu0 0.0
  %331 = vmatpush1.msra.mxu0 0.0
  %332 = vmatprep.subr.mxu0 0.0
  %333 = vmatpush1.msra.mxu0 0.0
  %334 = vmatprep.subr.mxu0 0.0
  %335 = vmatpush1.msra.mxu0 0.0
  %336 = vmatprep.subr.mxu0 0.0
  %337 = vmatpush1.msra.mxu0 0.0
  %338 = vmatprep.subr.mxu0 0.0
  %339 = vmatpush1.msra.mxu0 0.0
  %340 = vmatprep.subr.mxu0 0.0
  %341 = vmatpush1.msra.mxu0 0.0
  %342 = vmatprep.subr.mxu0 0.0
  %343 = vmatpush1.msra.mxu0 0.0
  %344 = vmatprep.subr.mxu0 0.0
  %345 = vmatpush1.msra.mxu0 0.0
  %346 = vmatprep.subr.mxu0 0.0
  %347 = vmatpush1.msra.mxu0 0.0
  %348 = vmatprep.subr.mxu0 0.0
  %349 = vmatpush1.msra.mxu0 0.0
  %350 = vmatprep.subr.mxu0 0.0
  %351 = vmatpush1.msra.mxu0 0.0
  %352 = vmatprep.subr.mxu0 0.0
  %353 = vmatpush1.msra.mxu0 0.0
  %354 = vmatprep.subr.mxu0 0.0
  %355 = vmatpush1.msra.mxu0 0.0
  %356 = vmatprep.subr.mxu0 0.0
  %357 = vmatpush1.msra.mxu0 0.0
  %358 = vmatprep.subr.mxu0 0.0
  %359 = vmatpush1.msra.mxu0 0.0
  %360 = vmatprep.subr.mxu0 0.0
  %361 = vmatpush1.msra.mxu0 0.0
  %362 = vmatprep.subr.mxu0 0.0
  %363 = vmatpush1.msra.mxu0 0.0
  %364 = vmatprep.subr.mxu0 0.0
  %365 = vmatpush1.msra.mxu0 0.0
  %366 = vmatprep.subr.mxu0 0.0
  %367 = vmatpush1.msra.mxu0 0.0
  %368 = vmatprep.subr.mxu0 0.0
  %369 = vmatpush1.msra.mxu0 0.0
  %370 = vmatprep.subr.mxu0 0.0
  %371 = vmatpush1.msra.mxu0 0.0
  %372 = vmatprep.subr.mxu0 0.0
  %373 = vmatpush1.msra.mxu0 0.0
  %374 = vmatprep.mubr.f32.mxu0 0.0
  %375 = vmatmul.mubr.f32.gmra.mrb[0].mxu0 %v237
  %v376 = vpop.f32.mrb[0].mxu0
  %v377 = vadd.f32 0.0, %v376
  %v378 = vpop.f32.mrb[0].mxu0
  %v379 = vadd.f32 0.0, %v378
  %380 = vdwg.mxu0
  %v381 = vmul.f32 %v306, %v306
  %v382 = vmul.f32 %v308, %v308
  %v383 = vsub.f32 %v377, %v381
  %v384 = vsub.f32 %v379, %v382
  %v385 = vmax.f32 %v383, 0.0
  %v386 = vmax.f32 %v384, 0.0
  %v387 = vsub.f32 %v230, %v306
  %v388 = vsub.f32 %v231, %v308
  %v389 = vadd.f32 %v385, 1e-05
  %v390 = vadd.f32 %v386, 1e-05
  %v391 = vrsqrt.pop %v389
  %v392 = vrsqrt.pop %v390
  %v393 = vmul.f32 %v387, %v391
  %v394 = vmul.f32 %v388, %v392
  %395 = vset.pattern.permute.xlu0 9
  %396 = vperm.xlu0 %395, %v13
  %v397 = vpop.permute.xlu0 %396
  %v399 = vmul.f32 %v393, %v397
  %v400 = vmul.f32 %v394, %v397
  %401 = vset.pattern.permute.xlu0 10
  %402 = vperm.xlu0 %401, %v13
  %v403 = vpop.permute.xlu0 %402
  %v405 = vadd.f32 %v399, %v403
  %v406 = vadd.f32 %v400, %v403
  %v407 = vmax.f32 %v405, 0.0
  %v408 = vmax.f32 %v406, 0.0
  %v409 = vadd.f32 %v407, %v408
  %410 = vadd.xlane.f32.xlu0 %v409
  %v411 = vpop.xlane.xlu0 %410
  %v412 = vmul.f32 %v411, 0.00390625
  %v413 = vmax.f32 %v407, %v408
  %414 = vmax.xlane.f32.xlu0 %v413
  %v415 = vpop.xlane.xlu0 %414
  %v416 = vmul.f32 %v412, %v13
  %v417 = vmul.f32 %v415, %v13
  %419 = vrot.lane.b32.xlu0 %v417, 112
  %v420 = vpop.permute.xlu0 %419
  %v422 = vadd.f32 %v416, %v420
  %vm423 = vcmask 281752
  %v424 = vsel %vm423, %v422, 0.0
  %v425 = vrot.slane %v424, 4
  %v426 = vadd.f32 %v424, %v425
  %v427 = vrot.slane %v426, 2
  %v428 = vadd.f32 %v426, %v427
  %v429 = vrot.slane %v428, 1
  %v430 = vadd.f32 %v428, %v429
  %v432 = vrot.slane %v422, 4
  %v434 = vsel %vm423, %v432, 0.0
  %v435 = vrot.slane %v434, 4
  %v436 = vadd.f32 %v434, %v435
  %v437 = vrot.slane %v436, 2
  %v438 = vadd.f32 %v436, %v437
  %v439 = vrot.slane %v438, 1
  %v440 = vadd.f32 %v438, %v439
  %vm441 = vcmask 1040384
  %v442 = vsel %vm441, %v430, %v440
  %v443 = vlaneseq
  %v444 = vshrl.u32 %v443, 7
  %v445 = vsub.s32 0, %v444
  %v446 = vrot.slane %v13, %v445
  %448 = vrot.lane.b32.xlu0 %v446, 96
  %v449 = vpop.permute.xlu0 %448
  %v451 = vadd.f32 %v442, %v449
  %v452 = vxor.u32 %v451, 2147483648
  %v453 = vmul.f32 %v452, 1.442695
  %v454 = vpow.pop %v453
  %v455 = vadd.f32 %v454, 1.0
  %v456 = vrcp.pop %v455
  %v457 = vmul.f32 1.0, %v456
  %v458 = vand.u32 2147483647, %v451
  %v459 = vadd.f32 %v458, 1.0
  %v460 = vrcp.pop %v459
  %v461 = vmul.f32 %v451, %v460
  %v462 = vmul.f32 %v461, 0.6981317
  %vm463 = vcmp.lt.s32.totalorder %v15, 8
  %465 = vrot.lane.b32.xlu0 %v457, 109
  %v466 = vpop.permute.xlu0 %465
  %469 = vrot.lane.b32.xlu0 %v462, 109
  %v470 = vpop.permute.xlu0 %469
  %v472 = vsel %vm463, %v466, %v470
  %vm473 = vcmask 123904
  %474 = vst.msk [vmem:[%s2] sm:$0x3] %vm473, %v472
  // Predicated region
  $region10: #{fwd.1} parent=0 // pred_check
    _
  $region11: #{fwd.1} parent=0 // pred_check_branch
    %476 = sbr.rel (0) target = $region13
  $region12: #{fwd.1} parent=0 // pred_region
    _
  $region13: #{fwd.1} parent=0 // pred_fallthru
    _
  // Predicated region
  $region14: #{fwd.1} parent=0 // pred_check
    _
  $region15: #{fwd.1} parent=0 // pred_check_branch
    %478 = sbr.rel (0) target = $region17
  $region16: #{fwd.1} parent=0 // pred_region
    _
  $region17: #{fwd.1} parent=0 // pred_fallthru
    _

</llo_original>
